<compile_context>
chip_gen: v5e
topology: v5e:2x2
jax: 0.10.0
libtpu: 0.0.40
codegen_flags: <defaults>
</compile_context>

<pallas_src>
import jax
import jax.numpy as jnp
from jax.experimental import pallas as pl
from jax.experimental.pallas import tpu as pltpu


def _discriminator_kernel(c_ref, wt_ref, b_ref, sb_ref, hpl_ref, hmi_ref, o_ref):
    # c_ref   : (1, n_h)        summary vector (row)
    # wt_ref  : (n_h, n_h)      W^T  (so that  c @ W^T == (W @ c) as a row)
    # b_ref   : (1,)  SMEM      bilinear bias (scalar)
    # sb_ref  : (2, tile_n)     [s_bias1 ; s_bias2] for this tile (zeros if None)
    # hpl_ref : (tile_n, n_h)   positive samples tile
    # hmi_ref : (tile_n, n_h)   negative samples tile
    # o_ref   : (2, tile_n)     row 0 = sc_1, row 1 = sc_2  (concatenated output)
    u = jnp.dot(c_ref[...], wt_ref[...],
                preferred_element_type=jnp.float32)          # (1, n_h) == (W @ c)^T

    b = b_ref[0]

    # Bilinear scores: sc[k] = h[k, :] . u   -- VPU multiply + lane reduce.
    sc1 = jnp.sum(hpl_ref[...] * u, axis=1).reshape(1, -1)   # (1, tile_n)
    sc2 = jnp.sum(hmi_ref[...] * u, axis=1).reshape(1, -1)   # (1, tile_n)

    o_ref[...] = jnp.concatenate([sc1, sc2], axis=0) + b + sb_ref[...]


def discriminator_forward(c, h_pl, h_mi, W, bias,
                          s_bias1=None, s_bias2=None, *, tile_n=None):
    """Pallas forward of Discriminator.

    c     : (n_h,)       summary vector
    h_pl  : (N, n_h)     positive node embeddings
    h_mi  : (N, n_h)     negative (corrupted) node embeddings
    W     : (n_h, n_h)   nn.Bilinear weight with the out_features=1 dim squeezed
    bias  : (1,)         nn.Bilinear bias
    s_bias1, s_bias2 : optional (N,) additive score biases
    returns logits of shape (2N,) == cat((sc_1, sc_2), 0)
    """
    n_h = c.shape[0]
    N = h_pl.shape[0]
    assert h_pl.shape == (N, n_h) and h_mi.shape == (N, n_h)
    assert W.shape == (n_h, n_h)

    if tile_n is None:
        tile_n = N if N <= 512 else 512     # bounded VMEM per step at large N
    grid = (pl.cdiv(N, tile_n),)

    c_row = c.reshape(1, n_h).astype(jnp.float32)
    w_t = W.T.astype(jnp.float32)           # one-time small relayout of the weight
    b = bias.reshape(1).astype(jnp.float32)

    sb1 = jnp.zeros((N,), jnp.float32) if s_bias1 is None else s_bias1.astype(jnp.float32)
    sb2 = jnp.zeros((N,), jnp.float32) if s_bias2 is None else s_bias2.astype(jnp.float32)
    sb = jnp.stack([sb1, sb2], axis=0)      # (2, N), matches output layout

    out = pl.pallas_call(
        _discriminator_kernel,
        out_shape=jax.ShapeDtypeStruct((2, N), jnp.float32),
        grid=grid,
        in_specs=[
            pl.BlockSpec((1, n_h), lambda i: (0, 0)),
            pl.BlockSpec((n_h, n_h), lambda i: (0, 0)),
            pl.BlockSpec(memory_space=pltpu.MemorySpace.SMEM),   # scalar bias
            pl.BlockSpec((2, tile_n), lambda i: (0, i)),
            pl.BlockSpec((tile_n, n_h), lambda i: (i, 0)),
            pl.BlockSpec((tile_n, n_h), lambda i: (i, 0)),
        ],
        out_specs=pl.BlockSpec((2, tile_n), lambda i: (0, i)),
        compiler_params=pltpu.CompilerParams(
            dimension_semantics=("parallel",)),
    )(c_row, w_t, b, sb, h_pl.astype(jnp.float32), h_mi.astype(jnp.float32))

    # Row-major flatten of (2, N) == torch.cat((sc_1, sc_2), 0); free (no copy).
    return out.reshape(-1)


def _reference(c, h_pl, h_mi, W, bias, s_bias1=None, s_bias2=None):
    """Pure-JAX reference mirroring the PyTorch module."""
    c_x = jnp.broadcast_to(c[None, :], h_pl.shape)
    sc1 = jnp.einsum("ni,ij,nj->n", h_pl, W, c_x, precision="highest") + bias[0]
    sc2 = jnp.einsum("ni,ij,nj->n", h_mi, W, c_x, precision="highest") + bias[0]
    if s_bias1 is not None:
        sc1 = sc1 + s_bias1
    if s_bias2 is not None:
        sc2 = sc2 + s_bias2
    return jnp.concatenate([sc1, sc2], axis=0)


if __name__ == "__main__":
    # Small shapes consistent with the module: hidden n_h=32, N=8 nodes.
    n_h, N = 32, 8
    key = jax.random.PRNGKey(0)
    k_c, k_pl, k_mi, k_w, k_b1, k_b2 = jax.random.split(key, 6)

    c = jax.random.normal(k_c, (n_h,), dtype=jnp.float32)
    h_pl = jax.random.normal(k_pl, (N, n_h), dtype=jnp.float32)
    h_mi = jax.random.normal(k_mi, (N, n_h), dtype=jnp.float32)

    # nn.Bilinear(n_h, n_h, 1): weight (1, n_h, n_h) xavier_uniform_, bias = 0.
    fan_in, fan_out = n_h * n_h, 1 * n_h
    bound = (6.0 / (fan_in + fan_out)) ** 0.5
    W = jax.random.uniform(k_w, (n_h, n_h), jnp.float32, -bound, bound)
    bias = jnp.zeros((1,), jnp.float32)

    # Case 1: default forward (s_bias1 = s_bias2 = None).
    logits = jax.block_until_ready(discriminator_forward(c, h_pl, h_mi, W, bias))
    ref = _reference(c, h_pl, h_mi, W, bias)
    assert logits.shape == (2 * N,)
    assert jnp.allclose(logits, ref, atol=1e-4, rtol=1e-4)

    # Case 2: with the optional additive score biases.
    s_bias1 = 0.1 * jax.random.normal(k_b1, (N,), dtype=jnp.float32)
    s_bias2 = 0.1 * jax.random.normal(k_b2, (N,), dtype=jnp.float32)
    logits_b = jax.block_until_ready(
        discriminator_forward(c, h_pl, h_mi, W, bias, s_bias1, s_bias2))
    ref_b = _reference(c, h_pl, h_mi, W, bias, s_bias1, s_bias2)
    assert jnp.allclose(logits_b, ref_b, atol=1e-4, rtol=1e-4)

    print("KERNEL_OK")
</pallas_src>

<mosaic_0001>
module attributes {stable_mosaic.version = 11 : i64} {
  func.func @_discriminator_kernel(%arg0: i32, %arg1: memref<1x32xf32, #tpu.memory_space<vmem>>, %arg2: memref<32x32xf32, #tpu.memory_space<vmem>>, %arg3: memref<1xf32, #tpu.memory_space<smem>>, %arg4: memref<2x8xf32, #tpu.memory_space<vmem>>, %arg5: memref<8x32xf32, #tpu.memory_space<vmem>>, %arg6: memref<8x32xf32, #tpu.memory_space<vmem>>, %arg7: memref<2x8xf32, #tpu.memory_space<vmem>>) attributes {dimension_semantics = [#tpu.dimension_semantics<parallel>], iteration_bounds = array<i64: 1>, scalar_prefetch = 0 : i64, scratch_operands = 0 : i64, tpu.core_type = #tpu.core_type<tc>, window_params = [{pipeline_mode = #tpu.pipeline_mode<synchronous>, transform_indices = @transform_0, window_bounds = array<i64: 1, 32>}, {pipeline_mode = #tpu.pipeline_mode<synchronous>, transform_indices = @transform_1, window_bounds = array<i64: 32, 32>}, {transform_indices = @transform_2, window_bounds = array<i64: 1>}, {transform_indices = @transform_3, window_bounds = array<i64: 2, 8>}, {transform_indices = @transform_4, window_bounds = array<i64: 8, 32>}, {transform_indices = @transform_5, window_bounds = array<i64: 8, 32>}, {transform_indices = @transform_6, window_bounds = array<i64: 2, 8>}]} {
    %c0 = arith.constant 0 : index
    %c0_0 = arith.constant 0 : index
    %0 = vector.load %arg1[%c0, %c0_0] : memref<1x32xf32, #tpu.memory_space<vmem>>, vector<1x32xf32>
    %c0_1 = arith.constant 0 : index
    %c0_2 = arith.constant 0 : index
    %1 = vector.load %arg2[%c0_1, %c0_2] : memref<32x32xf32, #tpu.memory_space<vmem>>, vector<32x32xf32>
    %cst = arith.constant dense<0.000000e+00> : vector<1x32xf32>
    %2 = tpu.matmul %0, %1, %cst {dimension_numbers = #tpu.dot_dimension_numbers<[1], [0], [0], [1], [0, 0, 1, 1], [], []>} : vector<1x32xf32>, vector<32x32xf32>, vector<1x32xf32> -> vector<1x32xf32>
    %c0_3 = arith.constant 0 : index
    %3 = memref.load %arg3[%c0_3] : memref<1xf32, #tpu.memory_space<smem>>
    %c0_4 = arith.constant 0 : index
    %c0_5 = arith.constant 0 : index
    %4 = vector.load %arg5[%c0_4, %c0_5] : memref<8x32xf32, #tpu.memory_space<vmem>>, vector<8x32xf32>
    %5 = vector.broadcast %2 : vector<1x32xf32> to vector<8x32xf32>
    %6 = arith.mulf %4, %5 : vector<8x32xf32>
    %cst_6 = arith.constant dense<0.000000e+00> : vector<8xf32>
    %7 = vector.multi_reduction <add>, %6, %cst_6 [1] : vector<8x32xf32> to vector<8xf32>
    %8 = vector.shape_cast %7 : vector<8xf32> to vector<1x8xf32>
    %c0_7 = arith.constant 0 : index
    %c0_8 = arith.constant 0 : index
    %9 = vector.load %arg6[%c0_7, %c0_8] : memref<8x32xf32, #tpu.memory_space<vmem>>, vector<8x32xf32>
    %10 = vector.broadcast %2 : vector<1x32xf32> to vector<8x32xf32>
    %11 = arith.mulf %9, %10 : vector<8x32xf32>
    %cst_9 = arith.constant dense<0.000000e+00> : vector<8xf32>
    %12 = vector.multi_reduction <add>, %11, %cst_9 [1] : vector<8x32xf32> to vector<8xf32>
    %13 = vector.shape_cast %12 : vector<8xf32> to vector<1x8xf32>
    %14 = tpu.concatenate %8, %13 in 0 : vector<1x8xf32>, vector<1x8xf32> -> vector<2x8xf32>
    %15 = vector.broadcast %3 : f32 to vector<2x8xf32>
    %16 = arith.addf %14, %15 : vector<2x8xf32>
    %c0_10 = arith.constant 0 : index
    %c0_11 = arith.constant 0 : index
    %17 = vector.load %arg4[%c0_10, %c0_11] : memref<2x8xf32, #tpu.memory_space<vmem>>, vector<2x8xf32>
    %18 = arith.addf %16, %17 : vector<2x8xf32>
    %c0_12 = arith.constant 0 : index
    %c0_13 = arith.constant 0 : index
    %19 = vector.load %arg7[%c0_12, %c0_13] : memref<2x8xf32, #tpu.memory_space<vmem>>, vector<2x8xf32>
    tpu.vector_store %arg7[%c0_12, %c0_13], %18 {strides = array<i32>} : memref<2x8xf32, #tpu.memory_space<vmem>>, vector<2x8xf32>,
    return
  }
  func.func @transform_0(%arg0: i32) -> (i32, i32) {
    %c0_i32 = arith.constant 0 : i32
    %c0_i32_0 = arith.constant 0 : i32
    %c0_i32_1 = arith.constant 0 : i32
    return %c0_i32, %c0_i32_0 : i32, i32
  }
  func.func @transform_1(%arg0: i32) -> (i32, i32) {
    %c0_i32 = arith.constant 0 : i32
    %c0_i32_0 = arith.constant 0 : i32
    %c0_i32_1 = arith.constant 0 : i32
    return %c0_i32, %c0_i32_0 : i32, i32
  }
  func.func @transform_2(%arg0: i32) -> i32 {
    %c0_i32 = arith.constant 0 : i32
    %c0_i32_0 = arith.constant 0 : i32
    return %c0_i32 : i32
  }
  func.func @transform_3(%arg0: i32) -> (i32, i32) {
    %c0_i32 = arith.constant 0 : i32
    %c0_i32_0 = arith.constant 0 : i32
    return %c0_i32, %arg0 : i32, i32
  }
  func.func @transform_4(%arg0: i32) -> (i32, i32) {
    %c0_i32 = arith.constant 0 : i32
    %c0_i32_0 = arith.constant 0 : i32
    return %arg0, %c0_i32 : i32, i32
  }
  func.func @transform_5(%arg0: i32) -> (i32, i32) {
    %c0_i32 = arith.constant 0 : i32
    %c0_i32_0 = arith.constant 0 : i32
    return %arg0, %c0_i32 : i32, i32
  }
  func.func @transform_6(%arg0: i32) -> (i32, i32) {
    %c0_i32 = arith.constant 0 : i32
    %c0_i32_0 = arith.constant 0 : i32
    return %c0_i32, %arg0 : i32, i32
  }
}

</mosaic_0001>

<llo_original>
// kernel: tpu_custom_call.1
$region0: #{tpu_custom_call.1}
  #allocation0 [shape = 'u32[]', space=smem, size = 0x4, offset = 0x4, fixed_abs, tag = 'smem constant byte address 0x4 - core index']
  #allocation1 [shape = 'u32[72,128]{1,0:T(1,128)}', space=vmem, size = 0x9000, scoped, tag = 'internal scratch']
  #allocation2 [shape = 'f32[1]{0:T(128)S(6)}', space=smem, size = 0x200, scoped, tag = 'scoped memory for tpu_custom_call.1']
  %s0 = inlined_call_operand.vmem [shape: f32[1,32], index: 0, kind: input, shape index: {}]
  %s1 = inlined_call_operand.hbm [shape: f32[32,32], index: 1, kind: input, shape index: {}]
  %s2 = inlined_call_operand.<no memory space> [shape: f32[1], index: 2, kind: input, shape index: {}]
  %s3 = inlined_call_operand.vmem [shape: f32[2,8], index: 3, kind: input, shape index: {}]
  %s4 = inlined_call_operand.hbm [shape: f32[8,32], index: 4, kind: input, shape index: {}]
  %s5 = inlined_call_operand.hbm [shape: f32[8,32], index: 5, kind: input, shape index: {}]
  %s6 = inlined_call_operand.hbm [shape: f32[2,8], index: 6, kind: output, shape index: {}]
  %s7 = sld [smem:[#allocation0]]
  $region46: #{tpu_custom_call.1} parent=0
    _
  %s9 = ssub.s32 1, %s7
  %s10 = scalar_select 0, %s9, %s7
  %11 = sst [smem:[#allocation2]] %s2
  $region1: #{tpu_custom_call.1} parent=0
    #allocation3 [shape = 'u8[16384]{0}', space=vmem, size = 0x4000, scoped, tag = 'input window, operand 1, single buffered']
    #allocation4 [shape = 's32[1]{0}', space=sflag, size = 0x4, scoped, tag = 'scoped memory for tpu_custom_call.1']
    #allocation5 [shape = 's32[1]{0}', space=sflag, size = 0x4, scoped, tag = 'scoped memory for tpu_custom_call.1']
    #allocation6 [shape = 'u8[4096]{0}', space=vmem, size = 0x1000, scoped, tag = 'input window, operand 4, single buffered']
    #allocation7 [shape = 's32[1]{0}', space=sflag, size = 0x4, scoped, tag = 'scoped memory for tpu_custom_call.1']
    #allocation8 [shape = 'u8[4096]{0}', space=vmem, size = 0x1000, scoped, tag = 'input window, operand 5, single buffered']
    #allocation9 [shape = 'u8[1024]{0}', space=vmem, size = 0x400, scoped, tag = 'output window, operand 0, single buffered']
    %12 = vsyncpa [#allocation4], 0
    %13 = vsyncpa [#allocation7], 0
    %14 = vsyncpa [#allocation5], 0
    // Predicated region
    $region2: #{tpu_custom_call.1} parent=1 // pred_check
      _
    $region3: #{tpu_custom_call.1} parent=1 // pred_check_branch
      %16 = sbr.rel (0) target = $region5
    $region4: #{tpu_custom_call.1} parent=1 // pred_region
      _
    $region5: #{tpu_custom_call.1} parent=1 // pred_fallthru
      _
    // Predicated region
    $region6: #{tpu_custom_call.1} parent=1 // pred_check
      _
    $region7: #{tpu_custom_call.1} parent=1 // pred_check_branch
      %18 = sbr.rel (0) target = $region9
    $region8: #{tpu_custom_call.1} parent=1 // pred_region
      %20 = vsyncadd [#allocation4], 0
      %s21 = sshll.u32 %s1, 4
      %s22 = int_to_ptr.hbm [resolvable:$true] %s21
      %s23 = sshll.u32 [#allocation3], 4
      %s24 = int_to_ptr.vmem [resolvable:$true] %s23
      %29 = dma.hbm_to_vmem [thread:$0]  %s22, 512, %s24, [#allocation4], 128, 128, 8
    $region9: #{tpu_custom_call.1} parent=1 // pred_fallthru
      _
    // Predicated region
    $region10: #{tpu_custom_call.1} parent=1 // pred_check
      _
    $region11: #{tpu_custom_call.1} parent=1 // pred_check_branch
      %31 = sbr.rel (0) target = $region13
    $region12: #{tpu_custom_call.1} parent=1 // pred_region
      _
    $region13: #{tpu_custom_call.1} parent=1 // pred_fallthru
      _
    // Predicated region
    $region14: #{tpu_custom_call.1} parent=1 // pred_check
      _
    $region15: #{tpu_custom_call.1} parent=1 // pred_check_branch
      %33 = sbr.rel (0) target = $region17
    $region16: #{tpu_custom_call.1} parent=1 // pred_region
      _
    $region17: #{tpu_custom_call.1} parent=1 // pred_fallthru
      _
    // Predicated region
    $region18: #{tpu_custom_call.1} parent=1 // pred_check
      _
    $region19: #{tpu_custom_call.1} parent=1 // pred_check_branch
      %35 = sbr.rel (0) target = $region21
    $region20: #{tpu_custom_call.1} parent=1 // pred_region
      %37 = vsyncadd [#allocation7], 0
      %s39 = sshll.u32 %s4, 4
      %s40 = int_to_ptr.hbm [resolvable:$true] %s39
      %s41 = sshll.u32 [#allocation6], 4
      %s42 = int_to_ptr.vmem [resolvable:$true] %s41
      %44 = dma.hbm_to_vmem [thread:$0]  %s40, 128, %s42, [#allocation7]
    $region21: #{tpu_custom_call.1} parent=1 // pred_fallthru
      _
    // Predicated region
    $region22: #{tpu_custom_call.1} parent=1 // pred_check
      _
    $region23: #{tpu_custom_call.1} parent=1 // pred_check_branch
      %46 = sbr.rel (0) target = $region25
    $region24: #{tpu_custom_call.1} parent=1 // pred_region
      %48 = vsyncadd [#allocation7], 0
      %s50 = sshll.u32 %s5, 4
      %s51 = int_to_ptr.hbm [resolvable:$true] %s50
      %s52 = sshll.u32 [#allocation8], 4
      %s53 = int_to_ptr.vmem [resolvable:$true] %s52
      %55 = dma.hbm_to_vmem [thread:$0]  %s51, 128, %s53, [#allocation7]
    $region25: #{tpu_custom_call.1} parent=1 // pred_fallthru
      _
    // Predicated region
    $region26: #{tpu_custom_call.1} parent=1 // pred_check
      _
    $region27: #{tpu_custom_call.1} parent=1 // pred_check_branch
      %57 = sbr.rel (0) target = $region29
    $region28: #{tpu_custom_call.1} parent=1 // pred_region
      %59 = dma.done [#allocation4], 512
    $region29: #{tpu_custom_call.1} parent=1 // pred_fallthru
      _
    // Predicated region
    $region30: #{tpu_custom_call.1} parent=1 // pred_check
      _
    $region31: #{tpu_custom_call.1} parent=1 // pred_check_branch
      %61 = sbr.rel (0) target = $region33
    $region32: #{tpu_custom_call.1} parent=1 // pred_region
      %63 = dma.done [#allocation7], 128
    $region33: #{tpu_custom_call.1} parent=1 // pred_fallthru
      _
    // Predicated region
    $region34: #{tpu_custom_call.1} parent=1 // pred_check
      _
    $region35: #{tpu_custom_call.1} parent=1 // pred_check_branch
      %65 = sbr.rel (0) target = $region37
    $region36: #{tpu_custom_call.1} parent=1 // pred_region
      %67 = dma.done [#allocation7], 128
    $region37: #{tpu_custom_call.1} parent=1 // pred_fallthru
      _
    %v68 = vld [vmem:[%s0] sm:$0x1]
    %v69 = vld [vmem:[#allocation3] sm:$0xff]
    %v70 = vld [vmem:[#allocation3 + $0x8] sm:$0xff]
    %v71 = vld [vmem:[#allocation3 + $0x10] sm:$0xff]
    %v72 = vld [vmem:[#allocation3 + $0x18] sm:$0xff]
    %vm73 = vcmask 261120
    %v75 = vsel %vm73, %v68, 0
    %77 = vmatpush.msra.mxu0 0.0
    %78 = vmatpush.msra.mxu0 0.0
    %79 = vmatpush.msra.mxu0 0.0
    %80 = vmatpush.msra.mxu0 0.0
    %81 = vmatpush.msra.mxu0 0.0
    %82 = vmatpush.msra.mxu0 0.0
    %83 = vmatpush.msra.mxu0 0.0
    %84 = vmatpush.msra.mxu0 0.0
    %85 = vmatpush.msra.mxu0 0.0
    %86 = vmatpush.msra.mxu0 0.0
    %87 = vmatpush.msra.mxu0 0.0
    %88 = vmatpush.msra.mxu0 0.0
    %89 = vmatpush.msra.mxu0 %v72
    %90 = vmatpush.msra.mxu0 %v71
    %91 = vmatpush.msra.mxu0 %v70
    %92 = vmatpush.msra.mxu0 %v69
    %93 = vmatmul.f32.gmra.mxu0 %v75
    %v94 = vpop.f32.mrf.mxu0
    %v95 = vadd.f32 0.0, %v94
    %96 = vdwg.mxu0
    %s97 = sld [smem:[#allocation2]]
    %v98 = vld [vmem:[#allocation6] sm:$0xff]
    %v99 = vperm.slane %v95, 0
    %v100 = vmul.f32 %v98, %v99
    %v101 = vsel %vm73, %v100, 0.0
    %102 = vadd.xlane.f32.xlu0 %v101
    %v103 = vpop.xlane.xlu0 %102
    %v104 = vld [vmem:[#allocation8] sm:$0xff]
    %v105 = vmul.f32 %v104, %v99
    %v106 = vsel %vm73, %v105, 0.0
    %107 = vadd.xlane.f32.xlu0 %v106
    %v108 = vpop.xlane.xlu0 %107
    %v110 = vlaneseq
    %v111 = vand.u32 %v110, 127
    %v112 = vperm.slane %v103, %v111
    %v115 = vperm.slane %v108, %v111
    %vm117 = vcmask 1040384
    %v118 = vsel %vm117, %v112, %v115
    %v119 = vstv %s97
    %v120 = vadd.f32 %v118, %v119
    %v121 = vld [vmem:[%s3] sm:$0x3]
    %v122 = vadd.f32 %v120, %v121
    %vm123 = vcmask 58368
    %124 = vst.msk [vmem:[#allocation9] sm:$0x3] %vm123, %v122
    // Predicated region
    $region38: #{tpu_custom_call.1} parent=1 // pred_check
      _
    $region39: #{tpu_custom_call.1} parent=1 // pred_check_branch
      %126 = sbr.rel (0) target = $region41
    $region40: #{tpu_custom_call.1} parent=1 // pred_region
      %128 = vsyncadd [#allocation5], 0
      %s130 = sshll.u32 [#allocation9], 4
      %s131 = int_to_ptr.vmem [resolvable:$true] %s130
      %s132 = sshll.u32 %s6, 4
      %s133 = int_to_ptr.hbm [resolvable:$true] %s132
      %135 = dma.vmem_to_hbm [thread:$0]  %s131, 32, %s133, [#allocation5]
    $region41: #{tpu_custom_call.1} parent=1 // pred_fallthru
      _
    // Predicated region
    $region42: #{tpu_custom_call.1} parent=1 // pred_check
      _
    $region43: #{tpu_custom_call.1} parent=1 // pred_check_branch
      %137 = sbr.rel (0) target = $region45
    $region44: #{tpu_custom_call.1} parent=1 // pred_region
      %139 = dma.done [#allocation5], 32
    $region45: #{tpu_custom_call.1} parent=1 // pred_fallthru
      _
    %140 = vsyncpa [#allocation4], 1
    %141 = vsyncpa [#allocation7], 1
    %142 = vsyncpa [#allocation5], 1

</llo_original>
